<compile_context>
chip_gen: v7x
topology: tpu7x:2x2x1
jax: 0.10.0
libtpu: 0.0.40
codegen_flags: <defaults>
</compile_context>

<pallas_src>
import math

import jax
import jax.numpy as jnp
from jax import lax
from jax.experimental import pallas as pl
from jax.experimental.pallas import tpu as pltpu


def _geglu_kernel(x_ref, wx_ref, wg_ref, bx_ref, bg_ref, o_ref):
    # x_ref:  (tm, dim_in)        wx_ref / wg_ref: (dim_in, tn)
    # bx_ref / bg_ref: (1, tn)    o_ref: (tm, tn)
    x = x_ref[...]
    h = jnp.dot(x, wx_ref[...], preferred_element_type=jnp.float32) + bx_ref[...]
    g = jnp.dot(x, wg_ref[...], preferred_element_type=jnp.float32) + bg_ref[...]
    # exact (erf-based) GELU, matching torch.nn.functional.gelu default
    gelu_g = 0.5 * g * (1.0 + lax.erf(g * (1.0 / math.sqrt(2.0))))
    o_ref[...] = (h * gelu_g).astype(o_ref.dtype)


def _round_up(x, n):
    return ((x + n - 1) // n) * n


def _pick_tiles(m, dim_in, dim_out, itemsize, budget_bytes=40 * 1024 * 1024):
    """Largest (tm, tn) whose double-buffered VMEM footprint fits the budget."""
    m8 = _round_up(m, 8)
    n128 = _round_up(dim_out, 128)

    def vmem_bytes(tm, tn):
        x_t = tm * dim_in * itemsize          # x tile
        w_t = 2 * dim_in * tn * itemsize      # wx + wg strips
        o_t = tm * tn * itemsize              # out tile
        b_t = 2 * tn * 4                      # f32 biases
        return 2 * (x_t + w_t + o_t + b_t)    # double-buffered

    for tm in (1024, 768, 512, 384, 256, 128):
        for tn in (512, 384, 256, 128):
            tm_c = min(tm, m8)
            tn_c = min(tn, n128)
            if vmem_bytes(tm_c, tn_c) <= budget_bytes:
                return tm_c, tn_c
    return min(128, m8), 128


def geglu(x, w, b):
    """GEGLU forward.

    x: (..., dim_in)
    w: (dim_in, 2*dim_out)   (transposed vs. torch's (2*dim_out, dim_in) weight)
    b: (2*dim_out,)
    returns: (..., dim_out)
    """
    dim_in = x.shape[-1]
    dim_out = w.shape[-1] // 2

    lead_shape = x.shape[:-1]
    m = math.prod(lead_shape) if lead_shape else 1
    x2d = x.reshape(m, dim_in)

    itemsize = jnp.dtype(x.dtype).itemsize
    tm, tn = _pick_tiles(m, dim_in, dim_out, itemsize)
    m_pad = _round_up(m, tm)
    n_pad = _round_up(dim_out, tn)

    # Pad rows of x (zeros) — sliced off below.
    if m_pad != m:
        x2d = jnp.pad(x2d, ((0, m_pad - m), (0, 0)))

    # Split projection into "value" and "gate" halves, pad dim_out -> n_pad.
    wx, wg = w[:, :dim_out], w[:, dim_out:]
    bx = b[:dim_out].astype(jnp.float32).reshape(1, dim_out)
    bg = b[dim_out:].astype(jnp.float32).reshape(1, dim_out)
    if n_pad != dim_out:
        pad_n = n_pad - dim_out
        wx = jnp.pad(wx, ((0, 0), (0, pad_n)))
        wg = jnp.pad(wg, ((0, 0), (0, pad_n)))
        bx = jnp.pad(bx, ((0, 0), (0, pad_n)))
        bg = jnp.pad(bg, ((0, 0), (0, pad_n)))

    n_tiles = n_pad // tn
    m_tiles = m_pad // tm

    w_itemsize = jnp.dtype(w.dtype).itemsize
    cost = pl.CostEstimate(
        flops=2 * 2 * m_pad * dim_in * n_pad + 6 * m_pad * n_pad,
        transcendentals=m_pad * n_pad,
        bytes_accessed=(m_pad * dim_in * itemsize
                        + 2 * dim_in * n_pad * w_itemsize
                        + 2 * n_pad * 4
                        + m_pad * n_pad * itemsize),
    )

    out2d = pl.pallas_call(
        _geglu_kernel,
        out_shape=jax.ShapeDtypeStruct((m_pad, n_pad), x.dtype),
        grid_spec=pltpu.PrefetchScalarGridSpec(
            num_scalar_prefetch=0,
            # N outer, M inner: weight strip for column-tile j stays VMEM-resident
            # across the whole M sweep (weight-stationary), x/out tiles stream.
            grid=(n_tiles, m_tiles),
            in_specs=[
                pl.BlockSpec((tm, dim_in), lambda j, i: (i, 0)),
                pl.BlockSpec((dim_in, tn), lambda j, i: (0, j)),
                pl.BlockSpec((dim_in, tn), lambda j, i: (0, j)),
                pl.BlockSpec((1, tn), lambda j, i: (0, j)),
                pl.BlockSpec((1, tn), lambda j, i: (0, j)),
            ],
            out_specs=pl.BlockSpec((tm, tn), lambda j, i: (i, j)),
        ),
        compiler_params=pltpu.CompilerParams(
            dimension_semantics=("parallel", "parallel"),
            vmem_limit_bytes=64 * 1024 * 1024,
        ),
        cost_estimate=cost,
    )(x2d, wx, wg, bx, bg)

    out2d = out2d[:m, :dim_out]
    return out2d.reshape(*lead_shape, dim_out)


def _reference(x, w, b):
    dim_out = w.shape[-1] // 2
    proj = jnp.einsum("...i,io->...o", x, w) + b
    h, g = proj[..., :dim_out], proj[..., dim_out:]
    return h * jax.nn.gelu(g, approximate=False)


if __name__ == "__main__":
    key = jax.random.PRNGKey(0)
    batch, seq, dim_in, dim_out = 2, 8, 32, 32

    kx, kw, kb = jax.random.split(key, 3)
    x = jax.random.normal(kx, (batch, seq, dim_in), dtype=jnp.float32)

    # deterministic Linear params, torch-style uniform(-1/sqrt(dim_in), 1/sqrt(dim_in))
    bound = 1.0 / math.sqrt(dim_in)
    w = jax.random.uniform(kw, (dim_in, 2 * dim_out), dtype=jnp.float32,
                           minval=-bound, maxval=bound)
    b = jax.random.uniform(kb, (2 * dim_out,), dtype=jnp.float32,
                           minval=-bound, maxval=bound)

    out = geglu(x, w, b)
    jax.block_until_ready(out)

    ref = _reference(x, w, b)
    assert out.shape == (batch, seq, dim_out)
    assert jnp.allclose(out, ref, atol=1e-5, rtol=1e-5), "mismatch vs reference"

    print("KERNEL_OK")
</pallas_src>

<mosaic_0001>
module attributes {stable_mosaic.version = 11 : i64} {
  func.func @_geglu_kernel(%arg0: i32, %arg1: i32, %arg2: memref<16x32xf32, #tpu.memory_space<vmem>>, %arg3: memref<32x128xf32, #tpu.memory_space<vmem>>, %arg4: memref<32x128xf32, #tpu.memory_space<vmem>>, %arg5: memref<1x128xf32, #tpu.memory_space<vmem>>, %arg6: memref<1x128xf32, #tpu.memory_space<vmem>>, %arg7: memref<16x128xf32, #tpu.memory_space<vmem>>) attributes {dimension_semantics = [#tpu.dimension_semantics<parallel>, #tpu.dimension_semantics<parallel>], iteration_bounds = array<i64: 1, 1>, scalar_prefetch = 0 : i64, scratch_operands = 0 : i64, tpu.core_type = #tpu.core_type<tc>, window_params = [{transform_indices = @transform_0, window_bounds = array<i64: 16, 32>}, {transform_indices = @transform_1, window_bounds = array<i64: 32, 128>}, {transform_indices = @transform_2, window_bounds = array<i64: 32, 128>}, {transform_indices = @transform_3, window_bounds = array<i64: 1, 128>}, {transform_indices = @transform_4, window_bounds = array<i64: 1, 128>}, {transform_indices = @transform_5, window_bounds = array<i64: 16, 128>}]} {
    %c0 = arith.constant 0 : index
    %c0_0 = arith.constant 0 : index
    %0 = vector.load %arg2[%c0, %c0_0] : memref<16x32xf32, #tpu.memory_space<vmem>>, vector<16x32xf32>
    %c0_1 = arith.constant 0 : index
    %c0_2 = arith.constant 0 : index
    %1 = vector.load %arg3[%c0_1, %c0_2] : memref<32x128xf32, #tpu.memory_space<vmem>>, vector<32x128xf32>
    %cst = arith.constant dense<0.000000e+00> : vector<16x128xf32>
    %2 = tpu.matmul %0, %1, %cst {dimension_numbers = #tpu.dot_dimension_numbers<[1], [0], [0], [1], [0, 0, 1, 1], [], []>} : vector<16x32xf32>, vector<32x128xf32>, vector<16x128xf32> -> vector<16x128xf32>
    %c0_3 = arith.constant 0 : index
    %c0_4 = arith.constant 0 : index
    %3 = vector.load %arg5[%c0_3, %c0_4] : memref<1x128xf32, #tpu.memory_space<vmem>>, vector<1x128xf32>
    %4 = vector.broadcast %3 : vector<1x128xf32> to vector<16x128xf32>
    %5 = arith.addf %2, %4 : vector<16x128xf32>
    %c0_5 = arith.constant 0 : index
    %c0_6 = arith.constant 0 : index
    %6 = vector.load %arg4[%c0_5, %c0_6] : memref<32x128xf32, #tpu.memory_space<vmem>>, vector<32x128xf32>
    %cst_7 = arith.constant dense<0.000000e+00> : vector<16x128xf32>
    %7 = tpu.matmul %0, %6, %cst_7 {dimension_numbers = #tpu.dot_dimension_numbers<[1], [0], [0], [1], [0, 0, 1, 1], [], []>} : vector<16x32xf32>, vector<32x128xf32>, vector<16x128xf32> -> vector<16x128xf32>
    %c0_8 = arith.constant 0 : index
    %c0_9 = arith.constant 0 : index
    %8 = vector.load %arg6[%c0_8, %c0_9] : memref<1x128xf32, #tpu.memory_space<vmem>>, vector<1x128xf32>
    %9 = vector.broadcast %8 : vector<1x128xf32> to vector<16x128xf32>
    %10 = arith.addf %7, %9 : vector<16x128xf32>
    %cst_10 = arith.constant 5.000000e-01 : f32
    %11 = vector.broadcast %cst_10 : f32 to vector<16x128xf32>
    %12 = arith.mulf %11, %10 : vector<16x128xf32>
    %cst_11 = arith.constant 0.707106769 : f32
    %13 = vector.broadcast %cst_11 : f32 to vector<16x128xf32>
    %14 = arith.mulf %10, %13 : vector<16x128xf32>
    %15 = math.erf %14 : vector<16x128xf32>
    %cst_12 = arith.constant 1.000000e+00 : f32
    %16 = vector.broadcast %cst_12 : f32 to vector<16x128xf32>
    %17 = arith.addf %16, %15 : vector<16x128xf32>
    %18 = arith.mulf %12, %17 : vector<16x128xf32>
    %19 = arith.mulf %5, %18 : vector<16x128xf32>
    %c0_13 = arith.constant 0 : index
    %c0_14 = arith.constant 0 : index
    %20 = vector.load %arg7[%c0_13, %c0_14] : memref<16x128xf32, #tpu.memory_space<vmem>>, vector<16x128xf32>
    tpu.vector_store %arg7[%c0_13, %c0_14], %19 {strides = array<i32>} : memref<16x128xf32, #tpu.memory_space<vmem>>, vector<16x128xf32>,
    return
  }
  func.func @transform_0(%arg0: i32, %arg1: i32) -> (i32, i32) {
    %c0_i32 = arith.constant 0 : i32
    %c0_i32_0 = arith.constant 0 : i32
    return %arg1, %c0_i32 : i32, i32
  }
  func.func @transform_1(%arg0: i32, %arg1: i32) -> (i32, i32) {
    %c0_i32 = arith.constant 0 : i32
    %c0_i32_0 = arith.constant 0 : i32
    return %c0_i32, %arg0 : i32, i32
  }
  func.func @transform_2(%arg0: i32, %arg1: i32) -> (i32, i32) {
    %c0_i32 = arith.constant 0 : i32
    %c0_i32_0 = arith.constant 0 : i32
    return %c0_i32, %arg0 : i32, i32
  }
  func.func @transform_3(%arg0: i32, %arg1: i32) -> (i32, i32) {
    %c0_i32 = arith.constant 0 : i32
    %c0_i32_0 = arith.constant 0 : i32
    return %c0_i32, %arg0 : i32, i32
  }
  func.func @transform_4(%arg0: i32, %arg1: i32) -> (i32, i32) {
    %c0_i32 = arith.constant 0 : i32
    %c0_i32_0 = arith.constant 0 : i32
    return %c0_i32, %arg0 : i32, i32
  }
  func.func @transform_5(%arg0: i32, %arg1: i32) -> (i32, i32) {
    %c0_i32 = arith.constant 0 : i32
    return %arg1, %arg0 : i32, i32
  }
}

</mosaic_0001>

<llo_original>
// kernel: tpu_custom_call.1
$region0: #{tpu_custom_call.1}
  #allocation0 [shape = 'u32[]', space=smem, size = 0x4, offset = 0x4, fixed_abs, tag = 'smem constant byte address 0x4 - core index']
  #allocation1 [shape = 'u32[144,128]{1,0:T(1,128)}', space=vmem, size = 0x12000, scoped, tag = 'internal scratch']
  %s0 = inlined_call_operand.hbm [shape: f32[16,32], index: 0, kind: input, shape index: {}]
  %s1 = inlined_call_operand.hbm [shape: f32[32,128], index: 1, kind: input, shape index: {}]
  %s2 = inlined_call_operand.hbm [shape: f32[32,128], index: 2, kind: input, shape index: {}]
  %s3 = inlined_call_operand.hbm [shape: f32[1,128], index: 3, kind: input, shape index: {}]
  %s4 = inlined_call_operand.hbm [shape: f32[1,128], index: 4, kind: input, shape index: {}]
  %s5 = inlined_call_operand.hbm [shape: f32[16,128], index: 5, kind: output, shape index: {}]
  %s6 = sld [smem:[#allocation0]]
  $region50: #{tpu_custom_call.1} parent=0
    _
  %s8 = ssub.s32 1, %s6
  %s9 = scalar_select 0, %s8, %s6
  $region1: #{tpu_custom_call.1} parent=0
    #allocation2 [shape = 'u8[8192]{0}', space=vmem, size = 0x2000, scoped, tag = 'input window, operand 0, single buffered']
    #allocation3 [shape = 's32[1]{0}', space=sflag, size = 0x4, scoped, tag = 'scoped memory for tpu_custom_call.1']
    #allocation4 [shape = 's32[1]{0}', space=sflag, size = 0x4, scoped, tag = 'scoped memory for tpu_custom_call.1']
    #allocation5 [shape = 'u8[16384]{0}', space=vmem, size = 0x4000, scoped, tag = 'input window, operand 1, single buffered']
    #allocation6 [shape = 's32[1]{0}', space=sflag, size = 0x4, scoped, tag = 'scoped memory for tpu_custom_call.1']
    #allocation7 [shape = 'u8[16384]{0}', space=vmem, size = 0x4000, scoped, tag = 'input window, operand 2, single buffered']
    #allocation8 [shape = 'u8[512]{0}', space=vmem, size = 0x400, scoped, tag = 'input window, operand 3, single buffered']
    #allocation9 [shape = 's32[1]{0}', space=sflag, size = 0x4, scoped, tag = 'scoped memory for tpu_custom_call.1']
    #allocation10 [shape = 'u8[512]{0}', space=vmem, size = 0x400, scoped, tag = 'input window, operand 4, single buffered']
    #allocation11 [shape = 'u8[8192]{0}', space=vmem, size = 0x2000, scoped, tag = 'output window, operand 0, single buffered']
    %10 = vsyncpa [#allocation3], 0
    %11 = vsyncpa [#allocation6], 0
    %12 = vsyncpa [#allocation9], 0
    %13 = vsyncpa [#allocation4], 0
    // Predicated region
    $region2: #{tpu_custom_call.1} parent=1 // pred_check
      _
    $region3: #{tpu_custom_call.1} parent=1 // pred_check_branch
      %15 = sbr.rel (0) target = $region5
    $region4: #{tpu_custom_call.1} parent=1 // pred_region
      %s17 = ssub.s32 256, 256
      %18 = vsyncadd [#allocation3], %s17
      %s19 = sshll.u32 [#allocation2], 4
      %s20 = int_to_ptr.vmem [resolvable:$true] %s19
      %25 = dma.hbm_to_vmem [thread:$0]  %s0, 256, %s20, [#allocation3], 128, 128, 8
    $region5: #{tpu_custom_call.1} parent=1 // pred_fallthru
      _
    // Predicated region
    $region6: #{tpu_custom_call.1} parent=1 // pred_check
      _
    $region7: #{tpu_custom_call.1} parent=1 // pred_check_branch
      %27 = sbr.rel (0) target = $region9
    $region8: #{tpu_custom_call.1} parent=1 // pred_region
      %s29 = ssub.s32 512, 512
      %30 = vsyncadd [#allocation6], %s29
      %s31 = sshll.u32 [#allocation5], 4
      %s32 = int_to_ptr.vmem [resolvable:$true] %s31
      %37 = dma.hbm_to_vmem [thread:$0]  %s1, 512, %s32, [#allocation6], 128, 128, 8
    $region9: #{tpu_custom_call.1} parent=1 // pred_fallthru
      _
    // Predicated region
    $region10: #{tpu_custom_call.1} parent=1 // pred_check
      _
    $region11: #{tpu_custom_call.1} parent=1 // pred_check_branch
      %39 = sbr.rel (0) target = $region13
    $region12: #{tpu_custom_call.1} parent=1 // pred_region
      %s41 = ssub.s32 512, 512
      %42 = vsyncadd [#allocation6], %s41
      %s43 = sshll.u32 [#allocation7], 4
      %s44 = int_to_ptr.vmem [resolvable:$true] %s43
      %49 = dma.hbm_to_vmem [thread:$0]  %s2, 512, %s44, [#allocation6], 128, 128, 8
    $region13: #{tpu_custom_call.1} parent=1 // pred_fallthru
      _
    // Predicated region
    $region14: #{tpu_custom_call.1} parent=1 // pred_check
      _
    $region15: #{tpu_custom_call.1} parent=1 // pred_check_branch
      %51 = sbr.rel (0) target = $region17
    $region16: #{tpu_custom_call.1} parent=1 // pred_region
      %s53 = ssub.s32 16, 16
      %54 = vsyncadd [#allocation9], %s53
      %s56 = sshll.u32 [#allocation8], 4
      %s57 = int_to_ptr.vmem [resolvable:$true] %s56
      %59 = dma.hbm_to_vmem [thread:$0]  %s3, 16, %s57, [#allocation9]
    $region17: #{tpu_custom_call.1} parent=1 // pred_fallthru
      _
    // Predicated region
    $region18: #{tpu_custom_call.1} parent=1 // pred_check
      _
    $region19: #{tpu_custom_call.1} parent=1 // pred_check_branch
      %61 = sbr.rel (0) target = $region21
    $region20: #{tpu_custom_call.1} parent=1 // pred_region
      %s63 = ssub.s32 16, 16
      %64 = vsyncadd [#allocation9], %s63
      %s66 = sshll.u32 [#allocation10], 4
      %s67 = int_to_ptr.vmem [resolvable:$true] %s66
      %69 = dma.hbm_to_vmem [thread:$0]  %s4, 16, %s67, [#allocation9]
    $region21: #{tpu_custom_call.1} parent=1 // pred_fallthru
      _
    // Predicated region
    $region22: #{tpu_custom_call.1} parent=1 // pred_check
      _
    $region23: #{tpu_custom_call.1} parent=1 // pred_check_branch
      %71 = sbr.rel (0) target = $region25
    $region24: #{tpu_custom_call.1} parent=1 // pred_region
      %72 = dma.done [#allocation3], 256
    $region25: #{tpu_custom_call.1} parent=1 // pred_fallthru
      _
    // Predicated region
    $region26: #{tpu_custom_call.1} parent=1 // pred_check
      _
    $region27: #{tpu_custom_call.1} parent=1 // pred_check_branch
      %74 = sbr.rel (0) target = $region29
    $region28: #{tpu_custom_call.1} parent=1 // pred_region
      %75 = dma.done [#allocation6], 512
    $region29: #{tpu_custom_call.1} parent=1 // pred_fallthru
      _
    // Predicated region
    $region30: #{tpu_custom_call.1} parent=1 // pred_check
      _
    $region31: #{tpu_custom_call.1} parent=1 // pred_check_branch
      %77 = sbr.rel (0) target = $region33
    $region32: #{tpu_custom_call.1} parent=1 // pred_region
      %78 = dma.done [#allocation6], 512
    $region33: #{tpu_custom_call.1} parent=1 // pred_fallthru
      _
    // Predicated region
    $region34: #{tpu_custom_call.1} parent=1 // pred_check
      _
    $region35: #{tpu_custom_call.1} parent=1 // pred_check_branch
      %80 = sbr.rel (0) target = $region37
    $region36: #{tpu_custom_call.1} parent=1 // pred_region
      %81 = dma.done [#allocation9], 16
    $region37: #{tpu_custom_call.1} parent=1 // pred_fallthru
      _
    // Predicated region
    $region38: #{tpu_custom_call.1} parent=1 // pred_check
      _
    $region39: #{tpu_custom_call.1} parent=1 // pred_check_branch
      %83 = sbr.rel (0) target = $region41
    $region40: #{tpu_custom_call.1} parent=1 // pred_region
      %84 = dma.done [#allocation9], 16
    $region41: #{tpu_custom_call.1} parent=1 // pred_fallthru
      _
    %v85 = vld [vmem:[#allocation2] sm:$0xff]
    %v86 = vld [vmem:[#allocation2 + $0x8] sm:$0xff]
    %v87 = vld [vmem:[#allocation5] sm:$0xff]
    %v88 = vld [vmem:[#allocation5 + $0x8] sm:$0xff]
    %v89 = vld [vmem:[#allocation5 + $0x10] sm:$0xff]
    %v90 = vld [vmem:[#allocation5 + $0x18] sm:$0xff]
    %v91 = vld [vmem:[#allocation8] sm:$0x1]
    %v93 = vlaneseq
    %v94 = vshrl.u32 %v93, 7
    %v95 = vsub.s32 0, %v94
    %v96 = vrot.slane %v91, %v95
    %vm98 = vcmask 261120
    %v100 = vsel %vm98, %v85, 0
    %v103 = vsel %vm98, %v86, 0
    %105 = vmatprep.subr.mxu0 0.0
    %106 = vmatpush1.msra.mxu0 %v87
    %107 = vmatprep.subr.mxu0 0.0
    %108 = vmatpush1.msra.mxu0 %v88
    %109 = vmatprep.subr.mxu0 0.0
    %110 = vmatpush1.msra.mxu0 %v89
    %111 = vmatprep.subr.mxu0 0.0
    %112 = vmatpush1.msra.mxu0 %v90
    %113 = vmatprep.subr.mxu0 0.0
    %114 = vmatpush1.msra.mxu0 0.0
    %115 = vmatprep.subr.mxu0 0.0
    %116 = vmatpush1.msra.mxu0 0.0
    %117 = vmatprep.subr.mxu0 0.0
    %118 = vmatpush1.msra.mxu0 0.0
    %119 = vmatprep.subr.mxu0 0.0
    %120 = vmatpush1.msra.mxu0 0.0
    %121 = vmatprep.subr.mxu0 0.0
    %122 = vmatpush1.msra.mxu0 0.0
    %123 = vmatprep.subr.mxu0 0.0
    %124 = vmatpush1.msra.mxu0 0.0
    %125 = vmatprep.subr.mxu0 0.0
    %126 = vmatpush1.msra.mxu0 0.0
    %127 = vmatprep.subr.mxu0 0.0
    %128 = vmatpush1.msra.mxu0 0.0
    %129 = vmatprep.subr.mxu0 0.0
    %130 = vmatpush1.msra.mxu0 0.0
    %131 = vmatprep.subr.mxu0 0.0
    %132 = vmatpush1.msra.mxu0 0.0
    %133 = vmatprep.subr.mxu0 0.0
    %134 = vmatpush1.msra.mxu0 0.0
    %135 = vmatprep.subr.mxu0 0.0
    %136 = vmatpush1.msra.mxu0 0.0
    %137 = vmatprep.subr.mxu0 0.0
    %138 = vmatpush1.msra.mxu0 0.0
    %139 = vmatprep.subr.mxu0 0.0
    %140 = vmatpush1.msra.mxu0 0.0
    %141 = vmatprep.subr.mxu0 0.0
    %142 = vmatpush1.msra.mxu0 0.0
    %143 = vmatprep.subr.mxu0 0.0
    %144 = vmatpush1.msra.mxu0 0.0
    %145 = vmatprep.subr.mxu0 0.0
    %146 = vmatpush1.msra.mxu0 0.0
    %147 = vmatprep.subr.mxu0 0.0
    %148 = vmatpush1.msra.mxu0 0.0
    %149 = vmatprep.subr.mxu0 0.0
    %150 = vmatpush1.msra.mxu0 0.0
    %151 = vmatprep.subr.mxu0 0.0
    %152 = vmatpush1.msra.mxu0 0.0
    %153 = vmatprep.subr.mxu0 0.0
    %154 = vmatpush1.msra.mxu0 0.0
    %155 = vmatprep.subr.mxu0 0.0
    %156 = vmatpush1.msra.mxu0 0.0
    %157 = vmatprep.subr.mxu0 0.0
    %158 = vmatpush1.msra.mxu0 0.0
    %159 = vmatprep.subr.mxu0 0.0
    %160 = vmatpush1.msra.mxu0 0.0
    %161 = vmatprep.subr.mxu0 0.0
    %162 = vmatpush1.msra.mxu0 0.0
    %163 = vmatprep.subr.mxu0 0.0
    %164 = vmatpush1.msra.mxu0 0.0
    %165 = vmatprep.subr.mxu0 0.0
    %166 = vmatpush1.msra.mxu0 0.0
    %167 = vmatprep.subr.mxu0 0.0
    %168 = vmatpush1.msra.mxu0 0.0
    %169 = vmatprep.mubr.f32.mxu0 0.0
    %170 = vmatmul.mubr.f32.gmra.mrb[0].mxu0 %v100
    %v171 = vpop.f32.mrb[0].mxu0
    %v172 = vadd.f32 %v96, %v171
    %v173 = vpop.f32.mrb[0].mxu0
    %174 = vmatprep.mubr.f32.mxu0 0.0
    %175 = vmatmul.mubr.f32.gmra.mrb[0].mxu0 %v103
    %v176 = vpop.f32.mrb[0].mxu0
    %v177 = vadd.f32 %v96, %v176
    %v178 = vpop.f32.mrb[0].mxu0
    %179 = vdwg.mxu0
    %v180 = vld [vmem:[#allocation7] sm:$0xff]
    %v181 = vld [vmem:[#allocation7 + $0x8] sm:$0xff]
    %v182 = vld [vmem:[#allocation7 + $0x10] sm:$0xff]
    %v183 = vld [vmem:[#allocation7 + $0x18] sm:$0xff]
    %v184 = vld [vmem:[#allocation10] sm:$0x1]
    %v186 = vlaneseq
    %v187 = vshrl.u32 %v186, 7
    %v188 = vsub.s32 0, %v187
    %v189 = vrot.slane %v184, %v188
    %191 = vmatprep.subr.mxu0 0.0
    %192 = vmatpush1.msra.mxu0 %v180
    %193 = vmatprep.subr.mxu0 0.0
    %194 = vmatpush1.msra.mxu0 %v181
    %195 = vmatprep.subr.mxu0 0.0
    %196 = vmatpush1.msra.mxu0 %v182
    %197 = vmatprep.subr.mxu0 0.0
    %198 = vmatpush1.msra.mxu0 %v183
    %199 = vmatprep.subr.mxu0 0.0
    %200 = vmatpush1.msra.mxu0 0.0
    %201 = vmatprep.subr.mxu0 0.0
    %202 = vmatpush1.msra.mxu0 0.0
    %203 = vmatprep.subr.mxu0 0.0
    %204 = vmatpush1.msra.mxu0 0.0
    %205 = vmatprep.subr.mxu0 0.0
    %206 = vmatpush1.msra.mxu0 0.0
    %207 = vmatprep.subr.mxu0 0.0
    %208 = vmatpush1.msra.mxu0 0.0
    %209 = vmatprep.subr.mxu0 0.0
    %210 = vmatpush1.msra.mxu0 0.0
    %211 = vmatprep.subr.mxu0 0.0
    %212 = vmatpush1.msra.mxu0 0.0
    %213 = vmatprep.subr.mxu0 0.0
    %214 = vmatpush1.msra.mxu0 0.0
    %215 = vmatprep.subr.mxu0 0.0
    %216 = vmatpush1.msra.mxu0 0.0
    %217 = vmatprep.subr.mxu0 0.0
    %218 = vmatpush1.msra.mxu0 0.0
    %219 = vmatprep.subr.mxu0 0.0
    %220 = vmatpush1.msra.mxu0 0.0
    %221 = vmatprep.subr.mxu0 0.0
    %222 = vmatpush1.msra.mxu0 0.0
    %223 = vmatprep.subr.mxu0 0.0
    %224 = vmatpush1.msra.mxu0 0.0
    %225 = vmatprep.subr.mxu0 0.0
    %226 = vmatpush1.msra.mxu0 0.0
    %227 = vmatprep.subr.mxu0 0.0
    %228 = vmatpush1.msra.mxu0 0.0
    %229 = vmatprep.subr.mxu0 0.0
    %230 = vmatpush1.msra.mxu0 0.0
    %231 = vmatprep.subr.mxu0 0.0
    %232 = vmatpush1.msra.mxu0 0.0
    %233 = vmatprep.subr.mxu0 0.0
    %234 = vmatpush1.msra.mxu0 0.0
    %235 = vmatprep.subr.mxu0 0.0
    %236 = vmatpush1.msra.mxu0 0.0
    %237 = vmatprep.subr.mxu0 0.0
    %238 = vmatpush1.msra.mxu0 0.0
    %239 = vmatprep.subr.mxu0 0.0
    %240 = vmatpush1.msra.mxu0 0.0
    %241 = vmatprep.subr.mxu0 0.0
    %242 = vmatpush1.msra.mxu0 0.0
    %243 = vmatprep.subr.mxu0 0.0
    %244 = vmatpush1.msra.mxu0 0.0
    %245 = vmatprep.subr.mxu0 0.0
    %246 = vmatpush1.msra.mxu0 0.0
    %247 = vmatprep.subr.mxu0 0.0
    %248 = vmatpush1.msra.mxu0 0.0
    %249 = vmatprep.subr.mxu0 0.0
    %250 = vmatpush1.msra.mxu0 0.0
    %251 = vmatprep.subr.mxu0 0.0
    %252 = vmatpush1.msra.mxu0 0.0
    %253 = vmatprep.subr.mxu0 0.0
    %254 = vmatpush1.msra.mxu0 0.0
    %255 = vmatprep.mubr.f32.mxu0 0.0
    %256 = vmatmul.mubr.f32.gmra.mrb[0].mxu0 %v100
    %v257 = vpop.f32.mrb[0].mxu0
    %v258 = vadd.f32 %v189, %v257
    %v259 = vpop.f32.mrb[0].mxu0
    %260 = vmatprep.mubr.f32.mxu0 0.0
    %261 = vmatmul.mubr.f32.gmra.mrb[0].mxu0 %v103
    %v262 = vpop.f32.mrb[0].mxu0
    %v263 = vadd.f32 %v189, %v262
    %v264 = vpop.f32.mrb[0].mxu0
    %265 = vdwg.mxu0
    %v266 = vmul.f32 %v258, 0.5
    %v267 = vmul.f32 %v263, 0.5
    %v268 = vmul.f32 %v258, 0.70710677
    %v269 = vmul.f32 %v263, 0.70710677
    %v270 = verf.f32.pop %v268
    %v271 = verf.f32.pop %v269
    %v272 = vadd.f32 %v270, 1.0
    %v273 = vadd.f32 %v271, 1.0
    %v274 = vmul.f32 %v266, %v272
    %v275 = vmul.f32 %v267, %v273
    %v276 = vmul.f32 %v172, %v274
    %v277 = vmul.f32 %v177, %v275
    %278 = vst [vmem:[#allocation11] sm:$0xff] %v276
    %279 = vst [vmem:[#allocation11 + $0x8] sm:$0xff] %v277
    // Predicated region
    $region42: #{tpu_custom_call.1} parent=1 // pred_check
      _
    $region43: #{tpu_custom_call.1} parent=1 // pred_check_branch
      %281 = sbr.rel (0) target = $region45
    $region44: #{tpu_custom_call.1} parent=1 // pred_region
      %s283 = ssub.s32 256, 256
      %284 = vsyncadd [#allocation4], %s283
      %s285 = sshll.u32 [#allocation11], 4
      %s286 = int_to_ptr.vmem [resolvable:$true] %s285
      %291 = dma.vmem_to_hbm [thread:$0]  %s286, 256, %s5, [#allocation4], 128, 128, 8
    $region45: #{tpu_custom_call.1} parent=1 // pred_fallthru
      _
    // Predicated region
    $region46: #{tpu_custom_call.1} parent=1 // pred_check
      _
    $region47: #{tpu_custom_call.1} parent=1 // pred_check_branch
      %293 = sbr.rel (0) target = $region49
    $region48: #{tpu_custom_call.1} parent=1 // pred_region
      %294 = dma.done [#allocation4], 256
    $region49: #{tpu_custom_call.1} parent=1 // pred_fallthru
      _
    %295 = vsyncpa [#allocation3], 1
    %296 = vsyncpa [#allocation6], 1
    %297 = vsyncpa [#allocation9], 1
    %298 = vsyncpa [#allocation4], 1

</llo_original>
